<compile_context>
chip_gen: v7x
topology: tpu7x:2x2x1
jax: 0.10.0
libtpu: 0.0.40
codegen_flags: <defaults>
</compile_context>

<pallas_src>
import numpy as np
import jax
import jax.numpy as jnp
from jax import lax
from jax.experimental import pallas as pl
from jax.experimental.pallas import tpu as pltpu

_VMEM_LIMIT = 48 * 1024 * 1024  # <= 64 MiB/core on v7x; conservative on v5e/v6e


def _round_up(n, m):
    return ((n + m - 1) // m) * m


# --------------------- hoisted input projection kernel ----------------------
def _proj_kernel(x_ref, w_ref, b_ref, o_ref):
    # x: (rt, Dp) bf16, w: (1, Dp, 4H) bf16, b: (1, 1, 4H) f32 -> o: (1, rt, 4H) bf16
    o_ref[0] = (jnp.dot(x_ref[...], w_ref[0], preferred_element_type=jnp.float32)
                + b_ref[0]).astype(o_ref.dtype)


def input_projection(x_rows, w_stk, b_stk, row_tile):
    """x_rows: (R, Dp) bf16; w_stk: (2, Dp, G) bf16; b_stk: (2, 1, G) f32 -> (2, R, G) bf16."""
    R, Dp = x_rows.shape
    G = w_stk.shape[-1]
    nrt = R // row_tile
    grid_spec = pltpu.PrefetchScalarGridSpec(
        num_scalar_prefetch=0,
        grid=(2, nrt),
        in_specs=[
            pl.BlockSpec((row_tile, Dp), lambda d, r: (r, 0)),
            pl.BlockSpec((1, Dp, G), lambda d, r: (d, 0, 0)),
            pl.BlockSpec((1, 1, G), lambda d, r: (d, 0, 0)),
        ],
        out_specs=pl.BlockSpec((1, row_tile, G), lambda d, r: (d, r, 0)),
    )
    return pl.pallas_call(
        _proj_kernel,
        out_shape=jax.ShapeDtypeStruct((2, R, G), jnp.bfloat16),
        grid_spec=grid_spec,
        compiler_params=pltpu.CompilerParams(
            dimension_semantics=("parallel", "parallel"),
            vmem_limit_bytes=_VMEM_LIMIT),
    )(x_rows, w_stk, b_stk)


# ------------------------- recurrent LSTM kernel -----------------------------
def _lstm_rec_kernel(len_ref, gx_ref, whh_ref, out_ref, h_sc, c_sc):
    d = pl.program_id(0)            # 0 = forward direction, 1 = backward
    tb = pl.program_id(1)           # time block
    nb = pl.num_programs(1)
    TC = gx_ref.shape[1]            # timesteps per block
    Bp = h_sc.shape[0]
    H = h_sc.shape[-1]

    @pl.when(tb == 0)
    def _():
        h_sc[...] = jnp.zeros_like(h_sc)
        c_sc[...] = jnp.zeros_like(c_sc)

    whh = whh_ref[0]                # (H, 4H) bf16
    lens = len_ref[...]             # (Bp, 1) int32, resident across the whole grid

    # original-time block this grid step works on (reversed for backward dir)
    tblock = d * (nb - 1) + (1 - 2 * d) * tb
    base_t = tblock * TC

    # lane mask picking the g gate columns (PyTorch gate order i, f, g, o);
    # hoisted out of the time loop (broadcasts are not CSE'd by JAX).
    col = lax.broadcasted_iota(jnp.int32, (Bp, 4 * H), 1)
    g_mask = (col >= 2 * H) & (col < 3 * H)

    def step(s, carry):
        h, c = carry
        loc = d * (TC - 1) + (1 - 2 * d) * s     # local original-time index in block
        gt = base_t + loc                        # global original-time index
        # recurrent matmul only; the input projection was hoisted (gx precomputed)
        gates = gx_ref[0, loc].astype(jnp.float32) + jnp.dot(
            h.astype(jnp.bfloat16), whh, preferred_element_type=jnp.float32)
        # one sigmoid pass + one tanh pass over the full gates vreg
        sig = jax.nn.sigmoid(gates)
        tnh = jnp.tanh(gates)
        act = jnp.where(g_mask, tnh, sig)
        i = act[:, 0:H]
        f = act[:, H:2 * H]
        g = act[:, 2 * H:3 * H]
        o = act[:, 3 * H:4 * H]
        c_new = f * c + i * g
        h_new = o * jnp.tanh(c_new)
        # packed-sequence semantics: state frozen / output zero on padded steps
        valid = gt < lens                        # (Bp, 1)
        c = jnp.where(valid, c_new, c)
        h = jnp.where(valid, h_new, h)
        out_ref[0, loc] = jnp.where(valid, h_new, 0.0).astype(out_ref.dtype)
        return h, c

    h_last, c_last = lax.fori_loop(0, TC, step, (h_sc[...], c_sc[...]),
                                   unroll=min(8, TC))
    h_sc[...] = h_last
    c_sc[...] = c_last


def bilstm_layer(x_tbd, lengths_col, w_ih_stk, w_hh_stk, b_stk, time_tile):
    """One bidirectional LSTM layer.
    x_tbd: (Tpad, Bp, Dp) f32/bf16 -> out: (2, Tpad, Bp, H) bf16 (dir-major, no concat)."""
    Tpad, Bp, Dp = x_tbd.shape
    H = w_hh_stk.shape[1]
    G = 4 * H

    # hoisted input projection over all timesteps, both directions at once
    rows = Tpad * Bp
    row_tile = min(_round_up(rows, 8), 512)
    rows_pad = _round_up(rows, row_tile)
    x_rows = x_tbd.reshape(rows, Dp).astype(jnp.bfloat16)
    if rows_pad != rows:
        x_rows = jnp.pad(x_rows, ((0, rows_pad - rows), (0, 0)))
    gx = input_projection(x_rows, w_ih_stk, b_stk, row_tile)
    if rows_pad != rows:
        gx = gx[:, :rows]
    gx = gx.reshape(2, Tpad, Bp, G)

    nb = Tpad // time_tile
    grid_spec = pltpu.PrefetchScalarGridSpec(
        num_scalar_prefetch=0,
        grid=(2, nb),
        in_specs=[
            pl.BlockSpec((Bp, 1), lambda d, t: (0, 0)),                 # lengths (resident)
            pl.BlockSpec((1, time_tile, Bp, G),
                         lambda d, t: (d, d * (nb - 1) + (1 - 2 * d) * t, 0, 0)),
            pl.BlockSpec((1, H, G), lambda d, t: (d, 0, 0)),
        ],
        out_specs=pl.BlockSpec((1, time_tile, Bp, H),
                               lambda d, t: (d, d * (nb - 1) + (1 - 2 * d) * t, 0, 0)),
        scratch_shapes=[pltpu.VMEM((Bp, H), jnp.float32),
                        pltpu.VMEM((Bp, H), jnp.float32)],
    )
    out = pl.pallas_call(
        _lstm_rec_kernel,
        out_shape=jax.ShapeDtypeStruct((2, Tpad, Bp, H), jnp.bfloat16),
        grid_spec=grid_spec,
        compiler_params=pltpu.CompilerParams(
            dimension_semantics=("parallel", "arbitrary"),   # directions on the 2 TCs (v7x)
            vmem_limit_bytes=_VMEM_LIMIT),
    )(lengths_col, gx, w_hh_stk)
    # out[0, t] = forward hidden at time t; out[1, t] = backward hidden at time t
    return out


# ----------------------------- dense head kernel -----------------------------
def _head_kernel(xf_ref, xb_ref, w1f_ref, w1b_ref, b1_ref, w2_ref, b2_ref, o_ref):
    # split-K first linear: x_fwd @ W1_top + x_bwd @ W1_bot  (no concat of directions)
    h = (jnp.dot(xf_ref[...], w1f_ref[...], preferred_element_type=jnp.float32)
         + jnp.dot(xb_ref[...], w1b_ref[...], preferred_element_type=jnp.float32)
         + b1_ref[...])
    h = jnp.where(h > 0, h, 2.0 * (jnp.exp(jnp.minimum(h, 0.0)) - 1.0))  # ELU(alpha=2.0)
    # logits kept f32 (padded-class bias is -1e30); classes on the lane axis (128-wide)
    logits = (jnp.dot(h.astype(jnp.bfloat16), w2_ref[...],
                      preferred_element_type=jnp.float32) + b2_ref[...])
    z = logits - jnp.max(logits, axis=-1, keepdims=True)
    e = jnp.exp(z)
    o_ref[...] = (e / jnp.sum(e, axis=-1, keepdims=True)).astype(o_ref.dtype)


def head_forward(rows_f, rows_b, w1f, w1b, b1, w2, b2, row_tile):
    Rp, H = rows_f.shape
    Mp = w1f.shape[-1]
    Cp = w2.shape[-1]
    nrt = Rp // row_tile
    grid_spec = pltpu.PrefetchScalarGridSpec(
        num_scalar_prefetch=0,
        grid=(nrt,),
        in_specs=[
            pl.BlockSpec((row_tile, H), lambda r: (r, 0)),
            pl.BlockSpec((row_tile, H), lambda r: (r, 0)),
            pl.BlockSpec((H, Mp), lambda r: (0, 0)),
            pl.BlockSpec((H, Mp), lambda r: (0, 0)),
            pl.BlockSpec((1, Mp), lambda r: (0, 0)),
            pl.BlockSpec((Mp, Cp), lambda r: (0, 0)),
            pl.BlockSpec((1, Cp), lambda r: (0, 0)),
        ],
        out_specs=pl.BlockSpec((row_tile, Cp), lambda r: (r, 0)),
    )
    return pl.pallas_call(
        _head_kernel,
        out_shape=jax.ShapeDtypeStruct((Rp, Cp), jnp.float32),
        grid_spec=grid_spec,
        compiler_params=pltpu.CompilerParams(
            dimension_semantics=("parallel",),
            vmem_limit_bytes=_VMEM_LIMIT),
    )(rows_f, rows_b, w1f, w1b, b1, w2, b2)


# ------------------------------ full forward ---------------------------------
def bilstm_model_2_forward(params, x_ids, lengths_np, time_tile=32):
    B, T = x_ids.shape
    Tmax = int(np.max(lengths_np))
    Bp = max(_round_up(B, 8), 8)                 # pad batch to the sublane quantum
    lens_full = np.zeros((Bp, 1), np.int32)
    lens_full[:B, 0] = np.asarray(lengths_np, np.int32)   # padded rows: length 0 -> masked
    lengths_col = jnp.asarray(lens_full)

    # embedding lookup (gather) kept as XLA glue
    emb = params["embedding"][x_ids].astype(jnp.float32)               # (B, T, E)
    h_in = jnp.transpose(emb, (1, 0, 2))                               # (T, B, E) time-major
    if Bp != B:
        h_in = jnp.pad(h_in, ((0, 0), (0, Bp - B), (0, 0)))

    # time tiling: large tiles for long sequences, clamped for short ones
    tt = min(time_tile, _round_up(T, 8))
    Tpad = _round_up(T, tt)
    if Tpad != T:
        h_in = jnp.pad(h_in, ((0, Tpad - T), (0, 0), (0, 0)))

    out = None
    for li, layer in enumerate(params["lstm"]):
        if li > 0:
            # TODO(synk): for >1 layers this concat could also be removed by a
            # split-K input projection; the test uses n_layers=1 so keep it simple.
            h_in = jnp.concatenate([out[0], out[1]], axis=-1).astype(jnp.float32)
        Din = h_in.shape[-1]
        Dp = _round_up(Din, 128)                    # lane-align K (101 -> 128)
        if Dp != Din:
            h_in = jnp.pad(h_in, ((0, 0), (0, 0), (0, Dp - Din)))
        w_ih_stk = jnp.stack([
            jnp.pad(layer["w_ih_f"], ((0, Dp - Din), (0, 0))),
            jnp.pad(layer["w_ih_b"], ((0, Dp - Din), (0, 0)))]).astype(jnp.bfloat16)
        w_hh_stk = jnp.stack([layer["w_hh_f"], layer["w_hh_b"]]).astype(jnp.bfloat16)
        b_stk = jnp.stack([layer["b_f"], layer["b_b"]])                # (2, 1, 4H) f32
        out = bilstm_layer(h_in, lengths_col, w_ih_stk, w_hh_stk, b_stk, tt)

    # pad_packed_sequence -> trim to max(lengths); nn.Dropout = identity at inference
    H = out.shape[-1]
    rows = Tmax * Bp
    rows_f = out[0, :Tmax].reshape(rows, H)                            # bf16, contiguous
    rows_b = out[1, :Tmax].reshape(rows, H)
    head_tile = min(_round_up(rows, 8), 256)
    rows_pad = _round_up(rows, head_tile)
    if rows_pad != rows:
        rows_f = jnp.pad(rows_f, ((0, rows_pad - rows), (0, 0)))
        rows_b = jnp.pad(rows_b, ((0, rows_pad - rows), (0, 0)))

    # head weights: split W1 over the two directions, pad hidden-out and class
    # dims to 128 lanes (pad class bias with -1e30 so softmax is unchanged)
    out_dim = params["w_lin"].shape[-1]
    Mp = _round_up(out_dim, 128)
    Cp = 128
    w1 = jnp.pad(params["w_lin"], ((0, 0), (0, Mp - out_dim))).astype(jnp.bfloat16)
    w1f, w1b = w1[:H], w1[H:]
    b1 = jnp.pad(params["b_lin"], ((0, 0), (0, Mp - out_dim)))
    w2 = jnp.pad(params["w_cls"], ((0, Mp - out_dim), (0, Cp - 9))).astype(jnp.bfloat16)
    b2 = jnp.pad(params["b_cls"], ((0, 0), (0, Cp - 9)), constant_values=-1e30)

    probs_rows = head_forward(rows_f, rows_b, w1f, w1b, b1, w2, b2, head_tile)  # (rows_pad, 128)
    probs = probs_rows[:rows].reshape(Tmax, Bp, Cp)[:, :B, :9]         # (Tmax, B, 9)
    return jnp.transpose(probs, (1, 2, 0))                             # (B, 9, Tmax)


# ------------------------------ parameters -----------------------------------
def init_params(key, vocab, embed_dim, n_layers, hidden_dim, out_dim):
    # NOTE: the reference module loads a zero `embedding_matrix`; here we use
    # deterministic random weights so the test is non-degenerate.
    # NOTE: b_f / b_b correspond to PyTorch's b_ih + b_hh (combined).
    bound = 1.0 / np.sqrt(hidden_dim)
    keys = iter(jax.random.split(key, 4 + 6 * n_layers + 1))

    def u(k, shape):
        return jax.random.uniform(k, shape, jnp.float32, -bound, bound)

    params = {"embedding": jax.random.normal(next(keys), (vocab, embed_dim), jnp.float32)}
    layers = []
    d_in = embed_dim
    for _ in range(n_layers):
        layers.append({
            "w_ih_f": u(next(keys), (d_in, 4 * hidden_dim)),
            "w_hh_f": u(next(keys), (hidden_dim, 4 * hidden_dim)),
            "b_f":    u(next(keys), (1, 4 * hidden_dim)),
            "w_ih_b": u(next(keys), (d_in, 4 * hidden_dim)),
            "w_hh_b": u(next(keys), (hidden_dim, 4 * hidden_dim)),
            "b_b":    u(next(keys), (1, 4 * hidden_dim)),
        })
        d_in = 2 * hidden_dim
    params["lstm"] = layers
    params["w_lin"] = u(next(keys), (2 * hidden_dim, out_dim))
    params["b_lin"] = u(next(keys), (1, out_dim))
    kc = next(keys)
    params["w_cls"] = jax.random.uniform(kc, (out_dim, 9), jnp.float32,
                                         -1.0 / np.sqrt(out_dim), 1.0 / np.sqrt(out_dim))
    params["b_cls"] = jnp.zeros((1, 9), jnp.float32)
    return params


if __name__ == "__main__":
    vocab, embed_dim, n_layers, hidden_dim, dropout_rate, out_dim = 20, 101, 1, 32, 0.3, 16
    B, T = 2, 8
    key = jax.random.PRNGKey(0)
    kx, kp = jax.random.split(key)
    x_ids = jax.random.randint(kx, (B, T), 0, vocab, dtype=jnp.int32)
    lengths_np = np.array([8, 5], dtype=np.int32)   # padded-sequence lengths

    params = init_params(kp, vocab, embed_dim, n_layers, hidden_dim, out_dim)
    out = bilstm_model_2_forward(params, x_ids, lengths_np)
    out = jax.block_until_ready(out)

    assert out.shape == (B, 9, int(lengths_np.max())), out.shape
    assert bool(jnp.all(jnp.isfinite(out)))
    # softmax over class dim (axis=1 after the implicit permute) sums to 1
    assert bool(jnp.allclose(jnp.sum(out, axis=1), 1.0, atol=1e-5))
    print("KERNEL_OK")
</pallas_src>

<mosaic_0001>
module attributes {stable_mosaic.version = 11 : i64} {
  func.func @_proj_kernel(%arg0: i32, %arg1: i32, %arg2: memref<64x128xbf16, #tpu.memory_space<vmem>>, %arg3: memref<1x128x128xbf16, #tpu.memory_space<vmem>>, %arg4: memref<1x1x128xf32, #tpu.memory_space<vmem>>, %arg5: memref<1x64x128xbf16, #tpu.memory_space<vmem>>) attributes {dimension_semantics = [#tpu.dimension_semantics<parallel>, #tpu.dimension_semantics<parallel>], iteration_bounds = array<i64: 2, 1>, scalar_prefetch = 0 : i64, scratch_operands = 0 : i64, tpu.core_type = #tpu.core_type<tc>, window_params = [{transform_indices = @transform_0, window_bounds = array<i64: 64, 128>}, {transform_indices = @transform_1, window_bounds = array<i64: 1, 128, 128>}, {transform_indices = @transform_2, window_bounds = array<i64: 1, 1, 128>}, {transform_indices = @transform_3, window_bounds = array<i64: 1, 64, 128>}]} {
    %c0 = arith.constant 0 : index
    %c0_0 = arith.constant 0 : index
    %0 = vector.load %arg2[%c0, %c0_0] : memref<64x128xbf16, #tpu.memory_space<vmem>>, vector<64x128xbf16>
    %c0_1 = arith.constant 0 : index
    %c0_2 = arith.constant 0 : index
    %c0_3 = arith.constant 0 : index
    %1 = vector.load %arg3[%c0_1, %c0_2, %c0_3] : memref<1x128x128xbf16, #tpu.memory_space<vmem>>, vector<1x128x128xbf16>
    %2 = vector.shape_cast %1 : vector<1x128x128xbf16> to vector<128x128xbf16>
    %cst = arith.constant dense<0.000000e+00> : vector<64x128xf32>
    %3 = tpu.matmul %0, %2, %cst {dimension_numbers = #tpu.dot_dimension_numbers<[1], [0], [0], [1], [0, 0, 1, 1], [], []>} : vector<64x128xbf16>, vector<128x128xbf16>, vector<64x128xf32> -> vector<64x128xf32>
    %c0_4 = arith.constant 0 : index
    %c0_5 = arith.constant 0 : index
    %c0_6 = arith.constant 0 : index
    %4 = vector.load %arg4[%c0_4, %c0_5, %c0_6] : memref<1x1x128xf32, #tpu.memory_space<vmem>>, vector<1x1x128xf32>
    %5 = vector.shape_cast %4 : vector<1x1x128xf32> to vector<1x128xf32>
    %6 = vector.broadcast %5 : vector<1x128xf32> to vector<64x128xf32>
    %7 = arith.addf %3, %6 : vector<64x128xf32>
    %8 = arith.truncf %7 : vector<64x128xf32> to vector<64x128xbf16>
    %c0_7 = arith.constant 0 : index
    %c0_8 = arith.constant 0 : index
    %c0_9 = arith.constant 0 : index
    %9 = vector.load %arg5[%c0_7, %c0_8, %c0_9] : memref<1x64x128xbf16, #tpu.memory_space<vmem>>, vector<1x64x128xbf16>
    %10 = vector.shape_cast %9 : vector<1x64x128xbf16> to vector<64x128xbf16>
    %11 = vector.shape_cast %8 : vector<64x128xbf16> to vector<1x64x128xbf16>
    tpu.vector_store %arg5[%c0_7, %c0_8, %c0_9], %11 {strides = array<i32>} : memref<1x64x128xbf16, #tpu.memory_space<vmem>>, vector<1x64x128xbf16>,
    return
  }
  func.func @transform_0(%arg0: i32, %arg1: i32) -> (i32, i32) {
    %c0_i32 = arith.constant 0 : i32
    %c0_i32_0 = arith.constant 0 : i32
    return %arg1, %c0_i32 : i32, i32
  }
  func.func @transform_1(%arg0: i32, %arg1: i32) -> (i32, i32, i32) {
    %c0_i32 = arith.constant 0 : i32
    %c0_i32_0 = arith.constant 0 : i32
    %c0_i32_1 = arith.constant 0 : i32
    return %arg0, %c0_i32, %c0_i32_0 : i32, i32, i32
  }
  func.func @transform_2(%arg0: i32, %arg1: i32) -> (i32, i32, i32) {
    %c0_i32 = arith.constant 0 : i32
    %c0_i32_0 = arith.constant 0 : i32
    %c0_i32_1 = arith.constant 0 : i32
    return %arg0, %c0_i32, %c0_i32_0 : i32, i32, i32
  }
  func.func @transform_3(%arg0: i32, %arg1: i32) -> (i32, i32, i32) {
    %c0_i32 = arith.constant 0 : i32
    %c0_i32_0 = arith.constant 0 : i32
    return %arg0, %arg1, %c0_i32 : i32, i32, i32
  }
}

</mosaic_0001>

<llo_original>
// kernel: tpu_custom_call.1
$region0: #{tpu_custom_call.1}
  #allocation0 [shape = 'u32[]', space=smem, size = 0x4, offset = 0x4, fixed_abs, tag = 'smem constant byte address 0x4 - core index']
  #allocation1 [shape = 'u32[144,128]{1,0:T(1,128)}', space=vmem, size = 0x12000, scoped, tag = 'internal scratch']
  %s0 = inlined_call_operand.hbm [shape: bf16[64,128], index: 0, kind: input, shape index: {}]
  %s1 = inlined_call_operand.hbm [shape: bf16[2,128,128], index: 1, kind: input, shape index: {}]
  %s2 = inlined_call_operand.vmem [shape: f32[2,1,128], index: 2, kind: input, shape index: {}]
  %s3 = inlined_call_operand.hbm [shape: bf16[2,64,128], index: 3, kind: output, shape index: {}]
  %s4 = sld [smem:[#allocation0]]
  $region53: #{tpu_custom_call.1} parent=0
    _
  %s6 = ssub.s32 1, %s4
  %s7 = scalar_select 0, %s6, %s4
  $region1: #{tpu_custom_call.1} parent=0
    #allocation2 [shape = 'u8[16384]{0}', space=vmem, size = 0x4000, scoped, tag = 'input window, operand 0, single buffered']
    #allocation3 [shape = 's32[2]{0}', space=sflag, size = 0x8, scoped, tag = 'scoped memory for tpu_custom_call.1']
    #allocation4 [shape = 's32[2]{0}', space=sflag, size = 0x8, scoped, tag = 'scoped memory for tpu_custom_call.1']
    #allocation5 [shape = 'u8[65536]{0}', space=vmem, size = 0x10000, scoped, tag = 'input window, operand 1']
    #allocation6 [shape = 's32[2]{0}', space=sflag, size = 0x8, scoped, tag = 'scoped memory for tpu_custom_call.1']
    #allocation7 [shape = 'u8[32768]{0}', space=vmem, size = 0x8000, scoped, tag = 'output window, operand 0']
    %8 = vsyncpa [#allocation3], 0
    %9 = vsyncpa [#allocation6], 0
    %s10 = scalar_lea.sflag [#allocation6], 1
    %11 = vsyncpa %s10, 0
    %12 = vsyncpa [#allocation4], 0
    %s13 = scalar_lea.sflag [#allocation4], 1
    %14 = vsyncpa %s13, 0
    loop: start=0, step=1, limit=4
    $region2: #{tpu_custom_call.1} parent=1 // loop_pre_header
      _
    $region3: #{tpu_custom_call.1} parent=1 // loop_header
      %s16 = sphi 0, %s20
      %p17 = scmp.ge.s32.totalorder %s16, 4
      %s23 = sphi 0, %s35
      %s24 = sphi 0, %s31
      %s25 = sphi 0, %s23
      %s26 = sphi 0, %s24
      %s27 = sphi 0, %s25
      %s28 = sphi 0, %s26
      %s38 = sphi 0, %s40
      %s41 = sphi 0, %s38
      %s42 = sphi 0, %s41
      %s58 = sphi 0, %s42
      %s64 = sphi 0, %s66
      %s67 = sphi 0, %s64
      %s68 = sphi 0, %s67
      %s84 = sphi 0, %s68
      %s90 = sphi 0, %s92
      %s93 = sphi 0, %s90
      %s94 = sphi 0, %s93
      %s110 = sphi 0, %s94
      %s118 = sphi 0, %s120
      %s121 = sphi 0, %s118
      %s122 = sphi 0, %s121
      %s138 = sphi 0, %s122
    $region4: #{tpu_custom_call.1} parent=1 // loop_header_branch
      %19 = sbr.rel (%p17) target = $region8
    $region5: #{tpu_custom_call.1} parent=1 // loop_body
      %s21 = ssub.s32 %s16, 1
      %s22 = ssub.s32 %s16, 2
      %s29 = sadd.s32 1, %s24
      %p30 = scmp.ge.s32.totalorder %s29, 1
      %s31 = scalar_select %p30, 0, %s29
      %s32 = sadd.s32 1, %s23
      %s33 = scalar_select %p30, %s32, %s23
      %p34 = scmp.ge.s32.totalorder %s33, 2
      %s35 = scalar_select %p34, 0, %s33
      %s36 = ssub.s32 %s24, %s31
      %p37 = scmp.eq.s32.totalorder %s36, 0
      %s39 = sadd.s32 %s38, 1
      %s40 = scalar_select %p37, %s38, %s39
      %p43 = pneg %p37
      %p44 = scmp.eq.s32.totalorder %s16, 1
      %p45 = por %p43, %p44
      %p46 = scmp.ne.s32.totalorder %s38, %s41
      %p47 = scmp.eq.s32.totalorder %s16, 0
      %p48 = por %p46, %p47
      %p49 = scmp.ne.s32.totalorder %s38, %s41
      %p50 = scmp.eq.s32.totalorder %s21, 1
      %p51 = por %p49, %p50
      %p52 = scmp.ne.s32.totalorder %s41, %s42
      %p53 = scmp.eq.s32.totalorder %s21, 0
      %p54 = por %p52, %p53
      %p55 = scmp.ne.s32.totalorder %s41, %s42
      %p56 = scmp.eq.s32.totalorder %s22, 1
      %p57 = por %p55, %p56
      %p59 = scmp.ne.s32.totalorder %s42, %s58
      %p60 = scmp.eq.s32.totalorder %s22, 0
      %p61 = por %p59, %p60
      %s62 = ssub.s32 %s23, %s35
      %p63 = scmp.eq.s32.totalorder %s62, 0
      %s65 = sadd.s32 %s64, 1
      %s66 = scalar_select %p63, %s64, %s65
      %p69 = pneg %p63
      %p70 = scmp.eq.s32.totalorder %s16, 1
      %p71 = por %p69, %p70
      %p72 = scmp.ne.s32.totalorder %s64, %s67
      %p73 = scmp.eq.s32.totalorder %s16, 0
      %p74 = por %p72, %p73
      %p75 = scmp.ne.s32.totalorder %s64, %s67
      %p76 = scmp.eq.s32.totalorder %s21, 1
      %p77 = por %p75, %p76
      %p78 = scmp.ne.s32.totalorder %s67, %s68
      %p79 = scmp.eq.s32.totalorder %s21, 0
      %p80 = por %p78, %p79
      %p81 = scmp.ne.s32.totalorder %s67, %s68
      %p82 = scmp.eq.s32.totalorder %s22, 1
      %p83 = por %p81, %p82
      %p85 = scmp.ne.s32.totalorder %s68, %s84
      %p86 = scmp.eq.s32.totalorder %s22, 0
      %p87 = por %p85, %p86
      %s88 = ssub.s32 %s23, %s35
      %p89 = scmp.eq.s32.totalorder %s88, 0
      %s91 = sadd.s32 %s90, 1
      %s92 = scalar_select %p89, %s90, %s91
      %p95 = pneg %p89
      %p96 = scmp.eq.s32.totalorder %s16, 1
      %p97 = por %p95, %p96
      %p98 = scmp.ne.s32.totalorder %s90, %s93
      %p99 = scmp.eq.s32.totalorder %s16, 0
      %p100 = por %p98, %p99
      %p101 = scmp.ne.s32.totalorder %s90, %s93
      %p102 = scmp.eq.s32.totalorder %s21, 1
      %p103 = por %p101, %p102
      %p104 = scmp.ne.s32.totalorder %s93, %s94
      %p105 = scmp.eq.s32.totalorder %s21, 0
      %p106 = por %p104, %p105
      %p107 = scmp.ne.s32.totalorder %s93, %s94
      %p108 = scmp.eq.s32.totalorder %s22, 1
      %p109 = por %p107, %p108
      %p111 = scmp.ne.s32.totalorder %s94, %s110
      %p112 = scmp.eq.s32.totalorder %s22, 0
      %p113 = por %p111, %p112
      %s114 = ssub.s32 %s23, %s35
      %s115 = ssub.s32 %s24, %s31
      %s116 = sor.u32 %s114, %s115
      %p117 = scmp.eq.s32.totalorder %s116, 0
      %s119 = sadd.s32 %s118, 1
      %s120 = scalar_select %p117, %s118, %s119
      %p123 = pneg %p117
      %p124 = scmp.eq.s32.totalorder %s16, 1
      %p125 = por %p123, %p124
      %p126 = scmp.ne.s32.totalorder %s118, %s121
      %p127 = scmp.eq.s32.totalorder %s16, 0
      %p128 = por %p126, %p127
      %p129 = scmp.ne.s32.totalorder %s118, %s121
      %p130 = scmp.eq.s32.totalorder %s21, 1
      %p131 = por %p129, %p130
      %p132 = scmp.ne.s32.totalorder %s121, %s122
      %p133 = scmp.eq.s32.totalorder %s21, 0
      %p134 = por %p132, %p133
      %p135 = scmp.ne.s32.totalorder %s121, %s122
      %p136 = scmp.eq.s32.totalorder %s22, 1
      %p137 = por %p135, %p136
      %p139 = scmp.ne.s32.totalorder %s122, %s138
      %p140 = scmp.eq.s32.totalorder %s22, 0
      %p141 = por %p139, %p140
      %p142 = scmp.le.s32.totalorder 1, %s16
      %p143 = scmp.lt.s32.totalorder %s16, 3
      %p144 = pnand %p142, %p143
      %p145 = pneg %p144
      // Predicated region
      $region9: #{tpu_custom_call.1} parent=5 // pred_check
        _
      $region10: #{tpu_custom_call.1} parent=5 // pred_check_branch
        %147 = sbr.rel (%p144) target = $region12
      $region11: #{tpu_custom_call.1} parent=5 // pred_region
        %s148 = ssub.s32 %s16, 1
        // Predicated region
        $region13: #{tpu_custom_call.1} parent=11 // pred_check
          %p149 = pneg %p54
        $region14: #{tpu_custom_call.1} parent=11 // pred_check_branch
          %151 = sbr.rel (%p149) target = $region16
        $region15: #{tpu_custom_call.1} parent=11 // pred_region
          %s152 = smul.u32 8, %s26
          %s154 = ssub.s32 512, 512
          %155 = vsyncadd [#allocation3], %s154
          %s156 = smul.addr %s152, 64
          %s157 = scalar_lea.hbm %s0, %s156
          %s158 = sshll.u32 [#allocation2], 4
          %s159 = int_to_ptr.vmem [resolvable:$true] %s158
          %164 = dma.hbm_to_vmem [thread:$0]  %s157, 512, %s159, [#allocation3], 64, 64, 4
        $region16: #{tpu_custom_call.1} parent=11 // pred_fallthru
          _
      $region12: #{tpu_custom_call.1} parent=5 // pred_fallthru
        _
      %p165 = scmp.lt.s32.totalorder %s16, 2
      // Predicated region
      $region17: #{tpu_custom_call.1} parent=5 // pred_check
        %p166 = pneg %p165
      $region18: #{tpu_custom_call.1} parent=5 // pred_check_branch
        %168 = sbr.rel (%p166) target = $region20
      $region19: #{tpu_custom_call.1} parent=5 // pred_region
        // Predicated region
        $region21: #{tpu_custom_call.1} parent=19 // pred_check
          %p169 = pneg %p74
        $region22: #{tpu_custom_call.1} parent=19 // pred_check_branch
          %171 = sbr.rel (%p169) target = $region24
        $region23: #{tpu_custom_call.1} parent=19 // pred_region
          %s172 = sand.u32 %s64, 1
          %s173 = scalar_lea.sflag [#allocation6], %s172
          %s174 = sand.u32 %s64, 1
          %s175 = smul.addr %s174, 64
          %s176 = scalar_lea.vmem [#allocation5], %s175
          %s178 = ssub.s32 1024, 1024
          %179 = vsyncadd %s173, %s178
          %s180 = smul.addr %s23, 16
          %s181 = smul.addr %s180, 64
          %s182 = scalar_lea.hbm %s1, %s181
          %s183 = sshll.u32 %s176, 4
          %s184 = int_to_ptr.vmem [resolvable:$true] %s183
          %189 = dma.hbm_to_vmem [thread:$0]  %s182, 1024, %s184, %s173, 64, 64, 4
        $region24: #{tpu_custom_call.1} parent=19 // pred_fallthru
          _
        // Predicated region
        $region25: #{tpu_custom_call.1} parent=19 // pred_check
          %p190 = pneg %p100
        $region26: #{tpu_custom_call.1} parent=19 // pred_check_branch
          %192 = sbr.rel (%p190) target = $region28
        $region27: #{tpu_custom_call.1} parent=19 // pred_region
          %p193 = scmp.lt.s32.totalorder %s23, 1
          %s194 = scalar_select %p193, %s23, 1
          %s195 = scalar_lea.vmem %s2, %s194
        $region28: #{tpu_custom_call.1} parent=19 // pred_fallthru
          _
      $region20: #{tpu_custom_call.1} parent=5 // pred_fallthru
        _
      %p196 = scmp.le.s32.totalorder 1, %s16
      %p197 = scmp.lt.s32.totalorder %s16, 3
      %p198 = pnand %p196, %p197
      %p199 = pneg %p198
      // Predicated region
      $region29: #{tpu_custom_call.1} parent=5 // pred_check
        _
      $region30: #{tpu_custom_call.1} parent=5 // pred_check_branch
        %201 = sbr.rel (%p198) target = $region32
      $region31: #{tpu_custom_call.1} parent=5 // pred_region
        %s202 = ssub.s32 %s16, 1
        // Predicated region
        $region33: #{tpu_custom_call.1} parent=31 // pred_check
          %p203 = pneg %p54
        $region34: #{tpu_custom_call.1} parent=31 // pred_check_branch
          %205 = sbr.rel (%p203) target = $region36
        $region35: #{tpu_custom_call.1} parent=31 // pred_region
          %206 = dma.done [#allocation3], 512
        $region36: #{tpu_custom_call.1} parent=31 // pred_fallthru
          _
        %s207 = sand.u32 %s67, 1
        %s208 = scalar_lea.sflag [#allocation6], %s207
        %s209 = sand.u32 %s67, 1
        %s210 = smul.addr %s209, 64
        %s211 = scalar_lea.vmem [#allocation5], %s210
        // Predicated region
        $region37: #{tpu_custom_call.1} parent=31 // pred_check
          %p212 = pneg %p80
        $region38: #{tpu_custom_call.1} parent=31 // pred_check_branch
          %214 = sbr.rel (%p212) target = $region40
        $region39: #{tpu_custom_call.1} parent=31 // pred_region
          %215 = dma.done %s208, 1024
        $region40: #{tpu_custom_call.1} parent=31 // pred_fallthru
          _
        %p216 = pneg %p54
        %p217 = pneg %p51
        %s218 = sand.u32 %s67, 1
        %s219 = scalar_lea.sflag [#allocation6], %s218
        %s220 = sand.u32 %s67, 1
        %s221 = smul.addr %s220, 64
        %s222 = scalar_lea.vmem [#allocation5], %s221
        %p223 = pneg %p80
        %p224 = pneg %p77
        %p225 = scmp.lt.s32.totalorder %s25, 1
        %s226 = scalar_select %p225, %s25, 1
        %s227 = scalar_lea.vmem %s2, %s226
        %p228 = pneg %p106
        %p229 = pneg %p103
        %p230 = pneg %p134
        %p231 = pneg %p131
        %s232 = sand.u32 %s121, 1
        %s233 = scalar_lea.sflag [#allocation4], %s232
        %s234 = sand.u32 %s121, 1
        %s235 = smul.addr %s234, 32
        %s236 = scalar_lea.vmem [#allocation7], %s235
        %s237 = smul.u32 8, %s26
        %p238 = scmp.lt.s32.totalorder %s25, 1
        %s239 = scalar_select %p238, %s25, 1
        %s240 = scalar_lea.vmem %s2, %s239
        %s241 = smul.u32 8, %s26
        %v243 = vld [vmem:[#allocation2] sm:$0xf]
        %v244 = vld [vmem:[#allocation2 + $0x4] sm:$0xf]
        %v245 = vld [vmem:[#allocation2 + $0x8] sm:$0xf]
        %v246 = vld [vmem:[#allocation2 + $0xc] sm:$0xf]
        %v247 = vld [vmem:[#allocation2 + $0x10] sm:$0xf]
        %v248 = vld [vmem:[#allocation2 + $0x14] sm:$0xf]
        %v249 = vld [vmem:[#allocation2 + $0x18] sm:$0xf]
        %v250 = vld [vmem:[#allocation2 + $0x1c] sm:$0xf]
        %v251 = vld [vmem:[%s211] sm:$0xf]
        %v252 = vld [vmem:[%s211 + $0x4] sm:$0xf]
        %v253 = vld [vmem:[%s211 + $0x8] sm:$0xf]
        %v254 = vld [vmem:[%s211 + $0xc] sm:$0xf]
        %v255 = vld [vmem:[%s211 + $0x10] sm:$0xf]
        %v256 = vld [vmem:[%s211 + $0x14] sm:$0xf]
        %v257 = vld [vmem:[%s211 + $0x18] sm:$0xf]
        %v258 = vld [vmem:[%s211 + $0x1c] sm:$0xf]
        %v259 = vld [vmem:[%s211 + $0x20] sm:$0xf]
        %v260 = vld [vmem:[%s211 + $0x24] sm:$0xf]
        %v261 = vld [vmem:[%s211 + $0x28] sm:$0xf]
        %v262 = vld [vmem:[%s211 + $0x2c] sm:$0xf]
        %v263 = vld [vmem:[%s211 + $0x30] sm:$0xf]
        %v264 = vld [vmem:[%s211 + $0x34] sm:$0xf]
        %v265 = vld [vmem:[%s211 + $0x38] sm:$0xf]
        %v266 = vld [vmem:[%s211 + $0x3c] sm:$0xf]
        %v267 = vld [vmem:[%s240] sm:$0x1]
        %v269 = vlaneseq
        %v270 = vshrl.u32 %v269, 7
        %v271 = vsub.s32 0, %v270
        %v272 = vrot.slane %v267, %v271
        %v282 = vunpack.c.l.b16 %v243
        %v283 = vunpack.c.l.b16 %v244
        %v284 = vunpack.c.l.b16 %v245
        %v285 = vunpack.c.l.b16 %v246
        %v286 = vunpack.c.l.b16 %v247
        %v287 = vunpack.c.l.b16 %v248
        %v288 = vunpack.c.l.b16 %v249
        %v289 = vunpack.c.l.b16 %v250
        %v290 = vpack.c.b16 %v283, %v282
        %v291 = vpack.c.b16 %v285, %v284
        %v292 = vpack.c.b16 %v287, %v286
        %v293 = vpack.c.b16 %v289, %v288
        %v314 = vunpack.c.l.b16 %v251
        %v315 = vunpack.c.l.b16 %v252
        %v316 = vunpack.c.l.b16 %v253
        %v317 = vunpack.c.l.b16 %v254
        %v318 = vunpack.c.l.b16 %v255
        %v319 = vunpack.c.l.b16 %v256
        %v320 = vunpack.c.l.b16 %v257
        %v321 = vunpack.c.l.b16 %v258
        %v322 = vunpack.c.l.b16 %v259
        %v323 = vunpack.c.l.b16 %v260
        %v324 = vunpack.c.l.b16 %v261
        %v325 = vunpack.c.l.b16 %v262
        %v326 = vunpack.c.l.b16 %v263
        %v327 = vunpack.c.l.b16 %v264
        %v328 = vunpack.c.l.b16 %v265
        %v329 = vunpack.c.l.b16 %v266
        %v330 = vpack.c.b16 %v315, %v314
        %v331 = vpack.c.b16 %v317, %v316
        %v332 = vpack.c.b16 %v319, %v318
        %v333 = vpack.c.b16 %v321, %v320
        %v334 = vpack.c.b16 %v323, %v322
        %v335 = vpack.c.b16 %v325, %v324
        %v336 = vpack.c.b16 %v327, %v326
        %v337 = vpack.c.b16 %v329, %v328
        %346 = vmatprep.subr.bf16.mxu0 0
        %347 = vmatpush1.bf16.msra.mxu0 %v330
        %348 = vmatprep.subr.bf16.mxu0 0
        %349 = vmatpush1.bf16.msra.mxu0 %v331
        %350 = vmatprep.subr.bf16.mxu0 0
        %351 = vmatpush1.bf16.msra.mxu0 %v332
        %352 = vmatprep.subr.bf16.mxu0 0
        %353 = vmatpush1.bf16.msra.mxu0 %v333
        %354 = vmatprep.subr.bf16.mxu0 0
        %355 = vmatpush1.bf16.msra.mxu0 %v334
        %356 = vmatprep.subr.bf16.mxu0 0
        %357 = vmatpush1.bf16.msra.mxu0 %v335
        %358 = vmatprep.subr.bf16.mxu0 0
        %359 = vmatpush1.bf16.msra.mxu0 %v336
        %360 = vmatprep.subr.bf16.mxu0 0
        %361 = vmatpush1.bf16.msra.mxu0 %v337
        %362 = vmatprep.subr.bf16.mxu0 0
        %363 = vmatpush1.bf16.msra.mxu0 0
        %364 = vmatprep.subr.bf16.mxu0 0
        %365 = vmatpush1.bf16.msra.mxu0 0
        %366 = vmatprep.subr.bf16.mxu0 0
        %367 = vmatpush1.bf16.msra.mxu0 0
        %368 = vmatprep.subr.bf16.mxu0 0
        %369 = vmatpush1.bf16.msra.mxu0 0
        %370 = vmatprep.subr.bf16.mxu0 0
        %371 = vmatpush1.bf16.msra.mxu0 0
        %372 = vmatprep.subr.bf16.mxu0 0
        %373 = vmatpush1.bf16.msra.mxu0 0
        %374 = vmatprep.subr.bf16.mxu0 0
        %375 = vmatpush1.bf16.msra.mxu0 0
        %376 = vmatprep.subr.bf16.mxu0 0
        %377 = vmatpush1.bf16.msra.mxu0 0
        %378 = vmatprep.mubr.bf16.mxu0 0
        %379 = vmatmul.mubr.bf16.gmra.mrb[0].mxu0 %v290
        %v380 = vpop.f32.mrb[0].mxu0
        %v381 = vadd.f32 %v272, %v380
        %v382 = vpop.f32.mrb[0].mxu0
        %v383 = vpop.f32.mrb[0].mxu0
        %v384 = vadd.f32 %v272, %v383
        %v385 = vpop.f32.mrb[0].mxu0
        %386 = vmatprep.mubr.bf16.mxu0 0
        %387 = vmatmul.mubr.bf16.gmra.mrb[0].mxu0 %v291
        %v388 = vpop.f32.mrb[0].mxu0
        %v389 = vadd.f32 %v272, %v388
        %v390 = vpop.f32.mrb[0].mxu0
        %v391 = vpop.f32.mrb[0].mxu0
        %v392 = vadd.f32 %v272, %v391
        %v393 = vpop.f32.mrb[0].mxu0
        %394 = vmatprep.mubr.bf16.mxu0 0
        %395 = vmatmul.mubr.bf16.gmra.mrb[0].mxu0 %v292
        %v396 = vpop.f32.mrb[0].mxu0
        %v397 = vadd.f32 %v272, %v396
        %v398 = vpop.f32.mrb[0].mxu0
        %v399 = vpop.f32.mrb[0].mxu0
        %v400 = vadd.f32 %v272, %v399
        %v401 = vpop.f32.mrb[0].mxu0
        %402 = vmatprep.mubr.bf16.mxu0 0
        %403 = vmatmul.mubr.bf16.gmra.mrb[0].mxu0 %v293
        %v404 = vpop.f32.mrb[0].mxu0
        %v405 = vadd.f32 %v272, %v404
        %v406 = vpop.f32.mrb[0].mxu0
        %v407 = vpop.f32.mrb[0].mxu0
        %v408 = vadd.f32 %v272, %v407
        %v409 = vpop.f32.mrb[0].mxu0
        %410 = vdwg.mxu0
        %v411 = vpack.c.bf16 %v384, %v381
        %v412 = vpack.c.bf16 %v392, %v389
        %v413 = vpack.c.bf16 %v400, %v397
        %v414 = vpack.c.bf16 %v408, %v405
        %v419 = vunpack.c.l.b16 %v411
        %v420 = vunpack.c.h.b16 %v411
        %v421 = vunpack.c.l.b16 %v412
        %v422 = vunpack.c.h.b16 %v412
        %v423 = vunpack.c.l.b16 %v413
        %v424 = vunpack.c.h.b16 %v413
        %v425 = vunpack.c.l.b16 %v414
        %v426 = vunpack.c.h.b16 %v414
        %v427 = vpack.c.b16 %v419, %v419
        %v428 = vpack.c.b16 %v420, %v420
        %v429 = vpack.c.b16 %v421, %v421
        %v430 = vpack.c.b16 %v422, %v422
        %v431 = vpack.c.b16 %v423, %v423
        %v432 = vpack.c.b16 %v424, %v424
        %v433 = vpack.c.b16 %v425, %v425
        %v434 = vpack.c.b16 %v426, %v426
        %443 = vst [vmem:[%s236] sm:$0xf] %v427
        %444 = vst [vmem:[%s236 + $0x4] sm:$0xf] %v428
        %445 = vst [vmem:[%s236 + $0x8] sm:$0xf] %v429
        %446 = vst [vmem:[%s236 + $0xc] sm:$0xf] %v430
        %447 = vst [vmem:[%s236 + $0x10] sm:$0xf] %v431
        %448 = vst [vmem:[%s236 + $0x14] sm:$0xf] %v432
        %449 = vst [vmem:[%s236 + $0x18] sm:$0xf] %v433
        %450 = vst [vmem:[%s236 + $0x1c] sm:$0xf] %v434
        %s451 = sand.u32 %s121, 1
        %s452 = scalar_lea.sflag [#allocation4], %s451
        %s453 = sand.u32 %s121, 1
        %s454 = smul.addr %s453, 32
        %s455 = scalar_lea.vmem [#allocation7], %s454
        // Predicated region
        $region41: #{tpu_custom_call.1} parent=31 // pred_check
          %p456 = pneg %p131
        $region42: #{tpu_custom_call.1} parent=31 // pred_check_branch
          %458 = sbr.rel (%p456) target = $region44
        $region43: #{tpu_custom_call.1} parent=31 // pred_region
          %s459 = smul.u32 8, %s26
          %s461 = ssub.s32 512, 512
          %462 = vsyncadd %s452, %s461
          %s463 = smul.addr %s25, 8
          %s464 = sadd.s32 %s459, %s463
          %s465 = smul.addr %s464, 64
          %s466 = scalar_lea.hbm %s3, %s465
          %s467 = sshll.u32 %s455, 4
          %s468 = int_to_ptr.vmem [resolvable:$true] %s467
          %473 = dma.vmem_to_hbm [thread:$0]  %s468, 512, %s466, %s452, 64, 64, 4
        $region44: #{tpu_custom_call.1} parent=31 // pred_fallthru
          _
      $region32: #{tpu_custom_call.1} parent=5 // pred_fallthru
        _
      %p474 = scmp.le.s32.totalorder 2, %s16
      // Predicated region
      $region45: #{tpu_custom_call.1} parent=5 // pred_check
        %p475 = pneg %p474
      $region46: #{tpu_custom_call.1} parent=5 // pred_check_branch
        %477 = sbr.rel (%p475) target = $region48
      $region47: #{tpu_custom_call.1} parent=5 // pred_region
        %s478 = ssub.s32 %s16, 2
        // Predicated region
        $region49: #{tpu_custom_call.1} parent=47 // pred_check
          %p479 = pneg %p137
        $region50: #{tpu_custom_call.1} parent=47 // pred_check_branch
          %481 = sbr.rel (%p479) target = $region52
        $region51: #{tpu_custom_call.1} parent=47 // pred_region
          %s482 = sand.u32 %s122, 1
          %s483 = scalar_lea.sflag [#allocation4], %s482
          %s484 = sand.u32 %s122, 1
          %s485 = smul.addr %s484, 32
          %s486 = scalar_lea.vmem [#allocation7], %s485
          %487 = dma.done %s483, 512
        $region52: #{tpu_custom_call.1} parent=47 // pred_fallthru
          _
      $region48: #{tpu_custom_call.1} parent=5 // pred_fallthru
        _
    $region6: #{tpu_custom_call.1} parent=1 // loop_footer
      %s20 = sadd.s32 1, %s16
    $region7: #{tpu_custom_call.1} parent=1 // loop_footer_branch
      %15 = sbr.rel target = $region3
    $region8: #{tpu_custom_call.1} parent=1 // loop_exit
      _
    %488 = vsyncpa [#allocation3], 1
    %s489 = scalar_lea.sflag [#allocation3], 1
    %490 = vsyncpa %s489, 1
    %491 = vsyncpa [#allocation6], 1
    %s492 = scalar_lea.sflag [#allocation6], 1
    %493 = vsyncpa %s492, 1
    %494 = vsyncpa [#allocation4], 1
    %s495 = scalar_lea.sflag [#allocation4], 1
    %496 = vsyncpa %s495, 1

</llo_original>
